<compile_context>
chip_gen: v7x
topology: tpu7x:2x2x1
jax: 0.10.0
libtpu: 0.0.40
codegen_flags: <defaults>
</compile_context>

<pallas_src>
import functools
import math

import jax
import jax.numpy as jnp
from jax import lax
from jax.experimental import pallas as pl
from jax.experimental.pallas import tpu as pltpu


def _gelu_tanh(x):
    # tanh-approx GELU; tanh lowers to the EUP (separate bundle slot), so the
    # gate nonlinearity stops saturating the VALU at small dim.
    # Max abs deviation vs the exact-erf F.gelu is ~1e-3 (<< bf16 GEMM error).
    c = 0.7978845608028654  # sqrt(2/pi)
    return 0.5 * x * (1.0 + jnp.tanh(c * (x + 0.044715 * x * x * x)))


def _ffn_kernel(x_ref, w1_ref, b1_ref, w2_ref, b2_ref, o_ref, *, nchunks, ck):
    # x_ref : (TM, dim)              f32   (cast to bf16 in-kernel for the MXU)
    # w1_ref: (nchunks, dim, 2*ck)   bf16  (cols [:ck]=value, [ck:]=gate)
    # b1_ref: (nchunks, 2, ck)       f32   (row 0 = value bias, row 1 = gate)
    # w2_ref: (nchunks, ck, dim_out) bf16
    # b2_ref: (1, dim_out)           f32
    tm = x_ref.shape[0]
    dim_out = o_ref.shape[1]
    x = x_ref[...].astype(jnp.bfloat16)

    def body(c, acc):
        h = jnp.dot(x, w1_ref[c], preferred_element_type=jnp.float32)  # (TM, 2*ck)
        b1c = b1_ref[c]                                                 # (2, ck)
        a = h[:, :ck] + b1c[0:1, :]
        g = h[:, ck:] + b1c[1:2, :]
        u = a * _gelu_tanh(g)                                           # GEGLU, f32
        return acc + jnp.dot(u.astype(jnp.bfloat16), w2_ref[c],
                             preferred_element_type=jnp.float32)

    acc0 = jnp.zeros((tm, dim_out), jnp.float32)
    acc = lax.fori_loop(0, nchunks, body, acc0, unroll=(nchunks <= 4))
    o_ref[...] = (acc + b2_ref[...]).astype(o_ref.dtype)


def prepare_ffn_params(w1, b1, w2, b2, chunk=512):
    """One-time weight prep (transpose + bf16 cast + per-chunk packing).

    w1: (2*inner, dim), b1: (2*inner,), w2: (dim_out, inner), b2: (dim_out,).
    Returns (w1_r, b1_r, w2_r, b2_r) ready for feedforward_pallas.
    """
    two_inner, dim = w1.shape
    inner = two_inner // 2
    dim_out = w2.shape[0]

    ck = inner
    for cand in (chunk, 384, 256, 128):
        if inner % cand == 0 and cand <= inner:
            ck = cand
            break
    # TODO(synk): masked tail chunk for inner not a multiple of 128.
    nchunks = inner // ck

    w1_t = jnp.transpose(w1).astype(jnp.bfloat16)                 # (dim, 2*inner)
    wv = w1_t[:, :inner].reshape(dim, nchunks, ck)
    wg = w1_t[:, inner:].reshape(dim, nchunks, ck)
    w1_r = jnp.transpose(jnp.concatenate([wv, wg], axis=-1), (1, 0, 2))  # (nc, dim, 2*ck)

    b1f = b1.astype(jnp.float32)
    b1_r = jnp.stack([b1f[:inner].reshape(nchunks, ck),
                      b1f[inner:].reshape(nchunks, ck)], axis=1)   # (nc, 2, ck)

    w2_r = jnp.transpose(w2).astype(jnp.bfloat16).reshape(nchunks, ck, dim_out)
    b2_r = b2.reshape(1, dim_out).astype(jnp.float32)
    return w1_r, b1_r, w2_r, b2_r


def _pick_tm(m):
    if m >= 512:
        return 256        # fills v6e/v7x 256-wide MXU; grid still >= 2 steps
    if m >= 32:
        half = (m + 1) // 2
        return min(128, ((half + 15) // 16) * 16)   # >= 2 grid steps (v7x 2 TCs)
    if m >= 16:
        return 16
    return m              # tiny m: block equals full array dim


def feedforward_pallas(x, params, *, out_dtype=None):
    """x: (..., dim); params from prepare_ffn_params. Returns (..., dim_out)."""
    w1_r, b1_r, w2_r, b2_r = params
    nchunks, dim, two_ck = w1_r.shape
    ck = two_ck // 2
    dim_out = w2_r.shape[-1]
    assert x.shape[-1] == dim

    lead = x.shape[:-1]
    m = int(math.prod(lead)) if lead else 1
    x2 = x.reshape(m, dim)                 # fold batch/seq into GEMM M (a view)
    tm = _pick_tm(m)
    out_dtype = x.dtype if out_dtype is None else out_dtype

    kernel = functools.partial(_ffn_kernel, nchunks=nchunks, ck=ck)
    out = pl.pallas_call(
        kernel,
        out_shape=jax.ShapeDtypeStruct((m, dim_out), out_dtype),
        grid=(pl.cdiv(m, tm),),            # no padding; partial tail is masked
        in_specs=[
            pl.BlockSpec((tm, dim), lambda i: (i, 0)),
            pl.BlockSpec((nchunks, dim, two_ck), lambda i: (0, 0, 0)),
            pl.BlockSpec((nchunks, 2, ck), lambda i: (0, 0, 0)),
            pl.BlockSpec((nchunks, ck, dim_out), lambda i: (0, 0, 0)),
            pl.BlockSpec((1, dim_out), lambda i: (0, 0)),
        ],
        out_specs=pl.BlockSpec((tm, dim_out), lambda i: (i, 0)),
        compiler_params=pltpu.CompilerParams(
            dimension_semantics=("parallel",),
            vmem_limit_bytes=64 * 1024 * 1024),   # v5e scoped default is 16 MiB
    )(x2, w1_r, b1_r, w2_r, b2_r)

    return out.reshape(*lead, dim_out)


# ---------------- pure-JAX reference (for correctness check) -------------
def ref_feedforward(x, w1, b1, w2, b2):
    h = x @ w1.T + b1
    a, g = jnp.split(h, 2, axis=-1)
    u = a * jax.nn.gelu(g, approximate=False)        # exact gelu, as in F.gelu
    return u @ w2.T + b2


def init_feedforward_params(key, dim, dim_out=None, mult=4):
    """PyTorch-style Linear init (uniform +-1/sqrt(fan_in)), deterministic."""
    inner = int(dim * mult)
    dim_out = dim if dim_out is None else dim_out
    k1, k2, k3, k4 = jax.random.split(key, 4)
    lim1 = 1.0 / math.sqrt(dim)
    w1 = jax.random.uniform(k1, (2 * inner, dim), jnp.float32, -lim1, lim1)
    b1 = jax.random.uniform(k2, (2 * inner,), jnp.float32, -lim1, lim1)
    lim2 = 1.0 / math.sqrt(inner)
    w2 = jax.random.uniform(k3, (dim_out, inner), jnp.float32, -lim2, lim2)
    b2 = jax.random.uniform(k4, (dim_out,), jnp.float32, -lim2, lim2)
    return w1, b1, w2, b2


if __name__ == "__main__":
    key = jax.random.PRNGKey(0)
    kx, kp = jax.random.split(key)

    # FeedForward(dim=128, mult=4) -> inner_dim=512, dim_out=dim=128
    batch, seq, dim = 2, 8, 128
    x = jax.random.normal(kx, (batch, seq, dim), jnp.float32)
    w1, b1, w2, b2 = init_feedforward_params(kp, dim)

    params = prepare_ffn_params(w1, b1, w2, b2)      # one-time weight prep
    out = feedforward_pallas(x, params)
    out = jax.block_until_ready(out)

    ref = ref_feedforward(x, w1, b1, w2, b2)
    assert out.shape == ref.shape, (out.shape, ref.shape)
    err = float(jnp.max(jnp.abs(out - ref)))
    # bf16 GEMM operands + tanh-approx gelu vs an all-f32 exact-erf reference.
    assert err < 4e-2, err

    print("KERNEL_OK")
</pallas_src>

<mosaic_0001>
module attributes {stable_mosaic.version = 11 : i64} {
  func.func @_ffn_kernel(%arg0: i32, %arg1: memref<16x128xf32, #tpu.memory_space<vmem>>, %arg2: memref<1x128x1024xbf16, #tpu.memory_space<vmem>>, %arg3: memref<1x2x512xf32, #tpu.memory_space<vmem>>, %arg4: memref<1x512x128xbf16, #tpu.memory_space<vmem>>, %arg5: memref<1x128xf32, #tpu.memory_space<vmem>>, %arg6: memref<16x128xf32, #tpu.memory_space<vmem>>) attributes {dimension_semantics = [#tpu.dimension_semantics<parallel>], iteration_bounds = array<i64: 1>, scalar_prefetch = 0 : i64, scratch_operands = 0 : i64, tpu.core_type = #tpu.core_type<tc>, window_params = [{transform_indices = @transform_0, window_bounds = array<i64: 16, 128>}, {pipeline_mode = #tpu.pipeline_mode<synchronous>, transform_indices = @transform_1, window_bounds = array<i64: 1, 128, 1024>}, {pipeline_mode = #tpu.pipeline_mode<synchronous>, transform_indices = @transform_2, window_bounds = array<i64: 1, 2, 512>}, {pipeline_mode = #tpu.pipeline_mode<synchronous>, transform_indices = @transform_3, window_bounds = array<i64: 1, 512, 128>}, {pipeline_mode = #tpu.pipeline_mode<synchronous>, transform_indices = @transform_4, window_bounds = array<i64: 1, 128>}, {transform_indices = @transform_5, window_bounds = array<i64: 16, 128>}]} {
    %c0 = arith.constant 0 : index
    %c0_0 = arith.constant 0 : index
    %0 = vector.load %arg1[%c0, %c0_0] : memref<16x128xf32, #tpu.memory_space<vmem>>, vector<16x128xf32>
    %1 = arith.truncf %0 : vector<16x128xf32> to vector<16x128xbf16>
    %cst = arith.constant 0.000000e+00 : f32
    %2 = vector.broadcast %cst : f32 to vector<16x128xf32>
    %c0_i32 = arith.constant 0 : i32
    %3 = arith.index_cast %c0_i32 : i32 to index
    %c0_1 = arith.constant 0 : index
    %c0_2 = arith.constant 0 : index
    %4 = vector.load %arg2[%3, %c0_1, %c0_2] : memref<1x128x1024xbf16, #tpu.memory_space<vmem>>, vector<1x128x1024xbf16>
    %5 = vector.shape_cast %4 : vector<1x128x1024xbf16> to vector<128x1024xbf16>
    %cst_3 = arith.constant dense<0.000000e+00> : vector<16x1024xf32>
    %6 = tpu.matmul %1, %5, %cst_3 {dimension_numbers = #tpu.dot_dimension_numbers<[1], [0], [0], [1], [0, 0, 1, 1], [], []>} : vector<16x128xbf16>, vector<128x1024xbf16>, vector<16x1024xf32> -> vector<16x1024xf32>
    %7 = arith.index_cast %c0_i32 : i32 to index
    %c0_4 = arith.constant 0 : index
    %c0_5 = arith.constant 0 : index
    %8 = vector.load %arg3[%7, %c0_4, %c0_5] : memref<1x2x512xf32, #tpu.memory_space<vmem>>, vector<1x2x512xf32>
    %9 = vector.shape_cast %8 : vector<1x2x512xf32> to vector<2x512xf32>
    %10 = vector.extract_strided_slice %6 {offsets = [0, 0], sizes = [16, 512], strides = [1, 1]} : vector<16x1024xf32> to vector<16x512xf32>
    %11 = vector.extract_strided_slice %9 {offsets = [0, 0], sizes = [1, 512], strides = [1, 1]} : vector<2x512xf32> to vector<1x512xf32>
    %12 = vector.broadcast %11 : vector<1x512xf32> to vector<16x512xf32>
    %13 = arith.addf %10, %12 : vector<16x512xf32>
    %14 = vector.extract_strided_slice %6 {offsets = [0, 512], sizes = [16, 512], strides = [1, 1]} : vector<16x1024xf32> to vector<16x512xf32>
    %15 = vector.extract_strided_slice %9 {offsets = [1, 0], sizes = [1, 512], strides = [1, 1]} : vector<2x512xf32> to vector<1x512xf32>
    %16 = vector.broadcast %15 : vector<1x512xf32> to vector<16x512xf32>
    %17 = arith.addf %14, %16 : vector<16x512xf32>
    %cst_6 = arith.constant 5.000000e-01 : f32
    %18 = vector.broadcast %cst_6 : f32 to vector<16x512xf32>
    %19 = arith.mulf %18, %17 : vector<16x512xf32>
    %cst_7 = arith.constant 4.471500e-02 : f32
    %20 = vector.broadcast %cst_7 : f32 to vector<16x512xf32>
    %21 = arith.mulf %20, %17 : vector<16x512xf32>
    %22 = arith.mulf %21, %17 : vector<16x512xf32>
    %23 = arith.mulf %22, %17 : vector<16x512xf32>
    %24 = arith.addf %17, %23 : vector<16x512xf32>
    %cst_8 = arith.constant 0.797884583 : f32
    %25 = vector.broadcast %cst_8 : f32 to vector<16x512xf32>
    %26 = arith.mulf %25, %24 : vector<16x512xf32>
    %27 = math.tanh %26 : vector<16x512xf32>
    %cst_9 = arith.constant 1.000000e+00 : f32
    %28 = vector.broadcast %cst_9 : f32 to vector<16x512xf32>
    %29 = arith.addf %28, %27 : vector<16x512xf32>
    %30 = arith.mulf %19, %29 : vector<16x512xf32>
    %31 = arith.mulf %13, %30 : vector<16x512xf32>
    %32 = arith.truncf %31 : vector<16x512xf32> to vector<16x512xbf16>
    %33 = arith.index_cast %c0_i32 : i32 to index
    %c0_10 = arith.constant 0 : index
    %c0_11 = arith.constant 0 : index
    %34 = vector.load %arg4[%33, %c0_10, %c0_11] : memref<1x512x128xbf16, #tpu.memory_space<vmem>>, vector<1x512x128xbf16>
    %35 = vector.shape_cast %34 : vector<1x512x128xbf16> to vector<512x128xbf16>
    %cst_12 = arith.constant dense<0.000000e+00> : vector<16x128xf32>
    %36 = tpu.matmul %32, %35, %cst_12 {dimension_numbers = #tpu.dot_dimension_numbers<[1], [0], [0], [1], [0, 0, 1, 1], [], []>} : vector<16x512xbf16>, vector<512x128xbf16>, vector<16x128xf32> -> vector<16x128xf32>
    %37 = arith.addf %2, %36 : vector<16x128xf32>
    %c1_i32 = arith.constant 1 : i32
    %c0_13 = arith.constant 0 : index
    %c0_14 = arith.constant 0 : index
    %38 = vector.load %arg5[%c0_13, %c0_14] : memref<1x128xf32, #tpu.memory_space<vmem>>, vector<1x128xf32>
    %39 = vector.broadcast %38 : vector<1x128xf32> to vector<16x128xf32>
    %40 = arith.addf %37, %39 : vector<16x128xf32>
    %c0_15 = arith.constant 0 : index
    %c0_16 = arith.constant 0 : index
    %41 = vector.load %arg6[%c0_15, %c0_16] : memref<16x128xf32, #tpu.memory_space<vmem>>, vector<16x128xf32>
    tpu.vector_store %arg6[%c0_15, %c0_16], %40 {strides = array<i32>} : memref<16x128xf32, #tpu.memory_space<vmem>>, vector<16x128xf32>,
    return
  }
  func.func @transform_0(%arg0: i32) -> (i32, i32) {
    %c0_i32 = arith.constant 0 : i32
    %c0_i32_0 = arith.constant 0 : i32
    return %arg0, %c0_i32 : i32, i32
  }
  func.func @transform_1(%arg0: i32) -> (i32, i32, i32) {
    %c0_i32 = arith.constant 0 : i32
    %c0_i32_0 = arith.constant 0 : i32
    %c0_i32_1 = arith.constant 0 : i32
    %c0_i32_2 = arith.constant 0 : i32
    return %c0_i32, %c0_i32_0, %c0_i32_1 : i32, i32, i32
  }
  func.func @transform_2(%arg0: i32) -> (i32, i32, i32) {
    %c0_i32 = arith.constant 0 : i32
    %c0_i32_0 = arith.constant 0 : i32
    %c0_i32_1 = arith.constant 0 : i32
    %c0_i32_2 = arith.constant 0 : i32
    return %c0_i32, %c0_i32_0, %c0_i32_1 : i32, i32, i32
  }
  func.func @transform_3(%arg0: i32) -> (i32, i32, i32) {
    %c0_i32 = arith.constant 0 : i32
    %c0_i32_0 = arith.constant 0 : i32
    %c0_i32_1 = arith.constant 0 : i32
    %c0_i32_2 = arith.constant 0 : i32
    return %c0_i32, %c0_i32_0, %c0_i32_1 : i32, i32, i32
  }
  func.func @transform_4(%arg0: i32) -> (i32, i32) {
    %c0_i32 = arith.constant 0 : i32
    %c0_i32_0 = arith.constant 0 : i32
    %c0_i32_1 = arith.constant 0 : i32
    return %c0_i32, %c0_i32_0 : i32, i32
  }
  func.func @transform_5(%arg0: i32) -> (i32, i32) {
    %c0_i32 = arith.constant 0 : i32
    %c0_i32_0 = arith.constant 0 : i32
    return %arg0, %c0_i32 : i32, i32
  }
}

</mosaic_0001>

<llo_original>
// kernel: tpu_custom_call.1
$region0: #{tpu_custom_call.1}
  #allocation0 [shape = 'u32[]', space=smem, size = 0x4, offset = 0x4, fixed_abs, tag = 'smem constant byte address 0x4 - core index']
  #allocation1 [shape = 'u32[144,128]{1,0:T(1,128)}', space=vmem, size = 0x12000, scoped, tag = 'internal scratch']
  %s0 = inlined_call_operand.hbm [shape: f32[16,128], index: 0, kind: input, shape index: {}]
  %s1 = inlined_call_operand.hbm [shape: bf16[1,128,1024], index: 1, kind: input, shape index: {}]
  %s2 = inlined_call_operand.hbm [shape: f32[1,2,512], index: 2, kind: input, shape index: {}]
  %s3 = inlined_call_operand.hbm [shape: bf16[1,512,128], index: 3, kind: input, shape index: {}]
  %s4 = inlined_call_operand.hbm [shape: f32[1,128], index: 4, kind: input, shape index: {}]
  %s5 = inlined_call_operand.hbm [shape: f32[16,128], index: 5, kind: output, shape index: {}]
  %s6 = sld [smem:[#allocation0]]
  $region50: #{tpu_custom_call.1} parent=0
    _
  %s8 = ssub.s32 1, %s6
  %s9 = scalar_select 0, %s8, %s6
  $region1: #{tpu_custom_call.1} parent=0
    #allocation2 [shape = 'u8[8192]{0}', space=vmem, size = 0x2000, scoped, tag = 'input window, operand 0, single buffered']
    #allocation3 [shape = 's32[1]{0}', space=sflag, size = 0x4, scoped, tag = 'scoped memory for tpu_custom_call.1']
    #allocation4 [shape = 's32[1]{0}', space=sflag, size = 0x4, scoped, tag = 'scoped memory for tpu_custom_call.1']
    #allocation5 [shape = 'u8[262144]{0}', space=vmem, size = 0x40000, scoped, tag = 'input window, operand 1, single buffered']
    #allocation6 [shape = 's32[1]{0}', space=sflag, size = 0x4, scoped, tag = 'scoped memory for tpu_custom_call.1']
    #allocation7 [shape = 'u8[4096]{0}', space=vmem, size = 0x1000, scoped, tag = 'input window, operand 2, single buffered']
    #allocation8 [shape = 'u8[131072]{0}', space=vmem, size = 0x20000, scoped, tag = 'input window, operand 3, single buffered']
    #allocation9 [shape = 's32[1]{0}', space=sflag, size = 0x4, scoped, tag = 'scoped memory for tpu_custom_call.1']
    #allocation10 [shape = 'u8[512]{0}', space=vmem, size = 0x400, scoped, tag = 'input window, operand 4, single buffered']
    #allocation11 [shape = 'u8[8192]{0}', space=vmem, size = 0x2000, scoped, tag = 'output window, operand 0, single buffered']
    %10 = vsyncpa [#allocation3], 0
    %11 = vsyncpa [#allocation6], 0
    %12 = vsyncpa [#allocation9], 0
    %13 = vsyncpa [#allocation4], 0
    // Predicated region
    $region2: #{tpu_custom_call.1} parent=1 // pred_check
      _
    $region3: #{tpu_custom_call.1} parent=1 // pred_check_branch
      %15 = sbr.rel (0) target = $region5
    $region4: #{tpu_custom_call.1} parent=1 // pred_region
      %s17 = ssub.s32 256, 256
      %18 = vsyncadd [#allocation3], %s17
      %s19 = sshll.u32 [#allocation2], 4
      %s20 = int_to_ptr.vmem [resolvable:$true] %s19
      %25 = dma.hbm_to_vmem [thread:$0]  %s0, 256, %s20, [#allocation3], 128, 128, 8
    $region5: #{tpu_custom_call.1} parent=1 // pred_fallthru
      _
    // Predicated region
    $region6: #{tpu_custom_call.1} parent=1 // pred_check
      _
    $region7: #{tpu_custom_call.1} parent=1 // pred_check_branch
      %27 = sbr.rel (0) target = $region9
    $region8: #{tpu_custom_call.1} parent=1 // pred_region
      %s29 = ssub.s32 8192, 8192
      %30 = vsyncadd [#allocation6], %s29
      %s31 = sshll.u32 [#allocation5], 4
      %s32 = int_to_ptr.vmem [resolvable:$true] %s31
      %37 = dma.hbm_to_vmem [thread:$0]  %s1, 8192, %s32, [#allocation6], 512, 512, 32
    $region9: #{tpu_custom_call.1} parent=1 // pred_fallthru
      _
    // Predicated region
    $region10: #{tpu_custom_call.1} parent=1 // pred_check
      _
    $region11: #{tpu_custom_call.1} parent=1 // pred_check_branch
      %39 = sbr.rel (0) target = $region13
    $region12: #{tpu_custom_call.1} parent=1 // pred_region
      %s41 = ssub.s32 128, 128
      %42 = vsyncadd [#allocation6], %s41
      %s44 = sshll.u32 [#allocation7], 4
      %s45 = int_to_ptr.vmem [resolvable:$true] %s44
      %47 = dma.hbm_to_vmem [thread:$0]  %s2, 128, %s45, [#allocation6]
    $region13: #{tpu_custom_call.1} parent=1 // pred_fallthru
      _
    // Predicated region
    $region14: #{tpu_custom_call.1} parent=1 // pred_check
      _
    $region15: #{tpu_custom_call.1} parent=1 // pred_check_branch
      %49 = sbr.rel (0) target = $region17
    $region16: #{tpu_custom_call.1} parent=1 // pred_region
      %s51 = ssub.s32 4096, 4096
      %52 = vsyncadd [#allocation9], %s51
      %s53 = sshll.u32 [#allocation8], 4
      %s54 = int_to_ptr.vmem [resolvable:$true] %s53
      %59 = dma.hbm_to_vmem [thread:$0]  %s3, 4096, %s54, [#allocation9], 64, 64, 4
    $region17: #{tpu_custom_call.1} parent=1 // pred_fallthru
      _
    // Predicated region
    $region18: #{tpu_custom_call.1} parent=1 // pred_check
      _
    $region19: #{tpu_custom_call.1} parent=1 // pred_check_branch
      %61 = sbr.rel (0) target = $region21
    $region20: #{tpu_custom_call.1} parent=1 // pred_region
      %s63 = ssub.s32 16, 16
      %64 = vsyncadd [#allocation9], %s63
      %s66 = sshll.u32 [#allocation10], 4
      %s67 = int_to_ptr.vmem [resolvable:$true] %s66
      %69 = dma.hbm_to_vmem [thread:$0]  %s4, 16, %s67, [#allocation9]
    $region21: #{tpu_custom_call.1} parent=1 // pred_fallthru
      _
    // Predicated region
    $region22: #{tpu_custom_call.1} parent=1 // pred_check
      _
    $region23: #{tpu_custom_call.1} parent=1 // pred_check_branch
      %71 = sbr.rel (0) target = $region25
    $region24: #{tpu_custom_call.1} parent=1 // pred_region
      %72 = dma.done [#allocation3], 256
    $region25: #{tpu_custom_call.1} parent=1 // pred_fallthru
      _
    // Predicated region
    $region26: #{tpu_custom_call.1} parent=1 // pred_check
      _
    $region27: #{tpu_custom_call.1} parent=1 // pred_check_branch
      %74 = sbr.rel (0) target = $region29
    $region28: #{tpu_custom_call.1} parent=1 // pred_region
      %75 = dma.done [#allocation6], 8192
    $region29: #{tpu_custom_call.1} parent=1 // pred_fallthru
      _
    // Predicated region
    $region30: #{tpu_custom_call.1} parent=1 // pred_check
      _
    $region31: #{tpu_custom_call.1} parent=1 // pred_check_branch
      %77 = sbr.rel (0) target = $region33
    $region32: #{tpu_custom_call.1} parent=1 // pred_region
      %78 = dma.done [#allocation6], 128
    $region33: #{tpu_custom_call.1} parent=1 // pred_fallthru
      _
    // Predicated region
    $region34: #{tpu_custom_call.1} parent=1 // pred_check
      _
    $region35: #{tpu_custom_call.1} parent=1 // pred_check_branch
      %80 = sbr.rel (0) target = $region37
    $region36: #{tpu_custom_call.1} parent=1 // pred_region
      %81 = dma.done [#allocation9], 4096
    $region37: #{tpu_custom_call.1} parent=1 // pred_fallthru
      _
    // Predicated region
    $region38: #{tpu_custom_call.1} parent=1 // pred_check
      _
    $region39: #{tpu_custom_call.1} parent=1 // pred_check_branch
      %83 = sbr.rel (0) target = $region41
    $region40: #{tpu_custom_call.1} parent=1 // pred_region
      %84 = dma.done [#allocation9], 16
    $region41: #{tpu_custom_call.1} parent=1 // pred_fallthru
      _
    %v86 = vld [vmem:[#allocation2] sm:$0xff]
    %v87 = vld [vmem:[#allocation2 + $0x8] sm:$0xff]
    %v88 = vpack.c.bf16 %v87, %v86
    %v89 = vld [vmem:[#allocation5] sm:$0xff]
    %v90 = vld [vmem:[#allocation5 + $0x8] sm:$0xff]
    %v91 = vld [vmem:[#allocation5 + $0x10] sm:$0xff]
    %v92 = vld [vmem:[#allocation5 + $0x18] sm:$0xff]
    %v93 = vld [vmem:[#allocation5 + $0x20] sm:$0xff]
    %v94 = vld [vmem:[#allocation5 + $0x28] sm:$0xff]
    %v95 = vld [vmem:[#allocation5 + $0x30] sm:$0xff]
    %v96 = vld [vmem:[#allocation5 + $0x38] sm:$0xff]
    %v97 = vld [vmem:[#allocation5 + $0x40] sm:$0xff]
    %v98 = vld [vmem:[#allocation5 + $0x48] sm:$0xff]
    %v99 = vld [vmem:[#allocation5 + $0x50] sm:$0xff]
    %v100 = vld [vmem:[#allocation5 + $0x58] sm:$0xff]
    %v101 = vld [vmem:[#allocation5 + $0x60] sm:$0xff]
    %v102 = vld [vmem:[#allocation5 + $0x68] sm:$0xff]
    %v103 = vld [vmem:[#allocation5 + $0x70] sm:$0xff]
    %v104 = vld [vmem:[#allocation5 + $0x78] sm:$0xff]
    %v105 = vld [vmem:[#allocation5 + $0x80] sm:$0xff]
    %v106 = vld [vmem:[#allocation5 + $0x88] sm:$0xff]
    %v107 = vld [vmem:[#allocation5 + $0x90] sm:$0xff]
    %v108 = vld [vmem:[#allocation5 + $0x98] sm:$0xff]
    %v109 = vld [vmem:[#allocation5 + $0xa0] sm:$0xff]
    %v110 = vld [vmem:[#allocation5 + $0xa8] sm:$0xff]
    %v111 = vld [vmem:[#allocation5 + $0xb0] sm:$0xff]
    %v112 = vld [vmem:[#allocation5 + $0xb8] sm:$0xff]
    %v113 = vld [vmem:[#allocation5 + $0xc0] sm:$0xff]
    %v114 = vld [vmem:[#allocation5 + $0xc8] sm:$0xff]
    %v115 = vld [vmem:[#allocation5 + $0xd0] sm:$0xff]
    %v116 = vld [vmem:[#allocation5 + $0xd8] sm:$0xff]
    %v117 = vld [vmem:[#allocation5 + $0xe0] sm:$0xff]
    %v118 = vld [vmem:[#allocation5 + $0xe8] sm:$0xff]
    %v119 = vld [vmem:[#allocation5 + $0xf0] sm:$0xff]
    %v120 = vld [vmem:[#allocation5 + $0xf8] sm:$0xff]
    %v121 = vld [vmem:[#allocation5 + $0x100] sm:$0xff]
    %v122 = vld [vmem:[#allocation5 + $0x108] sm:$0xff]
    %v123 = vld [vmem:[#allocation5 + $0x110] sm:$0xff]
    %v124 = vld [vmem:[#allocation5 + $0x118] sm:$0xff]
    %v125 = vld [vmem:[#allocation5 + $0x120] sm:$0xff]
    %v126 = vld [vmem:[#allocation5 + $0x128] sm:$0xff]
    %v127 = vld [vmem:[#allocation5 + $0x130] sm:$0xff]
    %v128 = vld [vmem:[#allocation5 + $0x138] sm:$0xff]
    %v129 = vld [vmem:[#allocation5 + $0x140] sm:$0xff]
    %v130 = vld [vmem:[#allocation5 + $0x148] sm:$0xff]
    %v131 = vld [vmem:[#allocation5 + $0x150] sm:$0xff]
    %v132 = vld [vmem:[#allocation5 + $0x158] sm:$0xff]
    %v133 = vld [vmem:[#allocation5 + $0x160] sm:$0xff]
    %v134 = vld [vmem:[#allocation5 + $0x168] sm:$0xff]
    %v135 = vld [vmem:[#allocation5 + $0x170] sm:$0xff]
    %v136 = vld [vmem:[#allocation5 + $0x178] sm:$0xff]
    %v137 = vld [vmem:[#allocation5 + $0x180] sm:$0xff]
    %v138 = vld [vmem:[#allocation5 + $0x188] sm:$0xff]
    %v139 = vld [vmem:[#allocation5 + $0x190] sm:$0xff]
    %v140 = vld [vmem:[#allocation5 + $0x198] sm:$0xff]
    %v141 = vld [vmem:[#allocation5 + $0x1a0] sm:$0xff]
    %v142 = vld [vmem:[#allocation5 + $0x1a8] sm:$0xff]
    %v143 = vld [vmem:[#allocation5 + $0x1b0] sm:$0xff]
    %v144 = vld [vmem:[#allocation5 + $0x1b8] sm:$0xff]
    %v145 = vld [vmem:[#allocation5 + $0x1c0] sm:$0xff]
    %v146 = vld [vmem:[#allocation5 + $0x1c8] sm:$0xff]
    %v147 = vld [vmem:[#allocation5 + $0x1d0] sm:$0xff]
    %v148 = vld [vmem:[#allocation5 + $0x1d8] sm:$0xff]
    %v149 = vld [vmem:[#allocation5 + $0x1e0] sm:$0xff]
    %v150 = vld [vmem:[#allocation5 + $0x1e8] sm:$0xff]
    %v151 = vld [vmem:[#allocation5 + $0x1f0] sm:$0xff]
    %v152 = vld [vmem:[#allocation5 + $0x1f8] sm:$0xff]
    %v217 = vunpack.c.l.b16 %v89
    %v218 = vunpack.c.h.b16 %v89
    %v219 = vunpack.c.l.b16 %v90
    %v220 = vunpack.c.h.b16 %v90
    %v221 = vunpack.c.l.b16 %v91
    %v222 = vunpack.c.h.b16 %v91
    %v223 = vunpack.c.l.b16 %v92
    %v224 = vunpack.c.h.b16 %v92
    %v225 = vunpack.c.l.b16 %v93
    %v226 = vunpack.c.h.b16 %v93
    %v227 = vunpack.c.l.b16 %v94
    %v228 = vunpack.c.h.b16 %v94
    %v229 = vunpack.c.l.b16 %v95
    %v230 = vunpack.c.h.b16 %v95
    %v231 = vunpack.c.l.b16 %v96
    %v232 = vunpack.c.h.b16 %v96
    %v233 = vunpack.c.l.b16 %v97
    %v234 = vunpack.c.h.b16 %v97
    %v235 = vunpack.c.l.b16 %v98
    %v236 = vunpack.c.h.b16 %v98
    %v237 = vunpack.c.l.b16 %v99
    %v238 = vunpack.c.h.b16 %v99
    %v239 = vunpack.c.l.b16 %v100
    %v240 = vunpack.c.h.b16 %v100
    %v241 = vunpack.c.l.b16 %v101
    %v242 = vunpack.c.h.b16 %v101
    %v243 = vunpack.c.l.b16 %v102
    %v244 = vunpack.c.h.b16 %v102
    %v245 = vunpack.c.l.b16 %v103
    %v246 = vunpack.c.h.b16 %v103
    %v247 = vunpack.c.l.b16 %v104
    %v248 = vunpack.c.h.b16 %v104
    %v249 = vunpack.c.l.b16 %v105
    %v250 = vunpack.c.h.b16 %v105
    %v251 = vunpack.c.l.b16 %v106
    %v252 = vunpack.c.h.b16 %v106
    %v253 = vunpack.c.l.b16 %v107
    %v254 = vunpack.c.h.b16 %v107
    %v255 = vunpack.c.l.b16 %v108
    %v256 = vunpack.c.h.b16 %v108
    %v257 = vunpack.c.l.b16 %v109
    %v258 = vunpack.c.h.b16 %v109
    %v259 = vunpack.c.l.b16 %v110
    %v260 = vunpack.c.h.b16 %v110
    %v261 = vunpack.c.l.b16 %v111
    %v262 = vunpack.c.h.b16 %v111
    %v263 = vunpack.c.l.b16 %v112
    %v264 = vunpack.c.h.b16 %v112
    %v265 = vunpack.c.l.b16 %v113
    %v266 = vunpack.c.h.b16 %v113
    %v267 = vunpack.c.l.b16 %v114
    %v268 = vunpack.c.h.b16 %v114
    %v269 = vunpack.c.l.b16 %v115
    %v270 = vunpack.c.h.b16 %v115
    %v271 = vunpack.c.l.b16 %v116
    %v272 = vunpack.c.h.b16 %v116
    %v273 = vunpack.c.l.b16 %v117
    %v274 = vunpack.c.h.b16 %v117
    %v275 = vunpack.c.l.b16 %v118
    %v276 = vunpack.c.h.b16 %v118
    %v277 = vunpack.c.l.b16 %v119
    %v278 = vunpack.c.h.b16 %v119
    %v279 = vunpack.c.l.b16 %v120
    %v280 = vunpack.c.h.b16 %v120
    %v281 = vunpack.c.l.b16 %v121
    %v282 = vunpack.c.h.b16 %v121
    %v283 = vunpack.c.l.b16 %v122
    %v284 = vunpack.c.h.b16 %v122
    %v285 = vunpack.c.l.b16 %v123
    %v286 = vunpack.c.h.b16 %v123
    %v287 = vunpack.c.l.b16 %v124
    %v288 = vunpack.c.h.b16 %v124
    %v289 = vunpack.c.l.b16 %v125
    %v290 = vunpack.c.h.b16 %v125
    %v291 = vunpack.c.l.b16 %v126
    %v292 = vunpack.c.h.b16 %v126
    %v293 = vunpack.c.l.b16 %v127
    %v294 = vunpack.c.h.b16 %v127
    %v295 = vunpack.c.l.b16 %v128
    %v296 = vunpack.c.h.b16 %v128
    %v297 = vunpack.c.l.b16 %v129
    %v298 = vunpack.c.h.b16 %v129
    %v299 = vunpack.c.l.b16 %v130
    %v300 = vunpack.c.h.b16 %v130
    %v301 = vunpack.c.l.b16 %v131
    %v302 = vunpack.c.h.b16 %v131
    %v303 = vunpack.c.l.b16 %v132
    %v304 = vunpack.c.h.b16 %v132
    %v305 = vunpack.c.l.b16 %v133
    %v306 = vunpack.c.h.b16 %v133
    %v307 = vunpack.c.l.b16 %v134
    %v308 = vunpack.c.h.b16 %v134
    %v309 = vunpack.c.l.b16 %v135
    %v310 = vunpack.c.h.b16 %v135
    %v311 = vunpack.c.l.b16 %v136
    %v312 = vunpack.c.h.b16 %v136
    %v313 = vunpack.c.l.b16 %v137
    %v314 = vunpack.c.h.b16 %v137
    %v315 = vunpack.c.l.b16 %v138
    %v316 = vunpack.c.h.b16 %v138
    %v317 = vunpack.c.l.b16 %v139
    %v318 = vunpack.c.h.b16 %v139
    %v319 = vunpack.c.l.b16 %v140
    %v320 = vunpack.c.h.b16 %v140
    %v321 = vunpack.c.l.b16 %v141
    %v322 = vunpack.c.h.b16 %v141
    %v323 = vunpack.c.l.b16 %v142
    %v324 = vunpack.c.h.b16 %v142
    %v325 = vunpack.c.l.b16 %v143
    %v326 = vunpack.c.h.b16 %v143
    %v327 = vunpack.c.l.b16 %v144
    %v328 = vunpack.c.h.b16 %v144
    %v329 = vunpack.c.l.b16 %v145
    %v330 = vunpack.c.h.b16 %v145
    %v331 = vunpack.c.l.b16 %v146
    %v332 = vunpack.c.h.b16 %v146
    %v333 = vunpack.c.l.b16 %v147
    %v334 = vunpack.c.h.b16 %v147
    %v335 = vunpack.c.l.b16 %v148
    %v336 = vunpack.c.h.b16 %v148
    %v337 = vunpack.c.l.b16 %v149
    %v338 = vunpack.c.h.b16 %v149
    %v339 = vunpack.c.l.b16 %v150
    %v340 = vunpack.c.h.b16 %v150
    %v341 = vunpack.c.l.b16 %v151
    %v342 = vunpack.c.h.b16 %v151
    %v343 = vunpack.c.l.b16 %v152
    %v344 = vunpack.c.h.b16 %v152
    %v345 = vpack.c.b16 %v225, %v217
    %v346 = vpack.c.b16 %v226, %v218
    %v347 = vpack.c.b16 %v227, %v219
    %v348 = vpack.c.b16 %v228, %v220
    %v349 = vpack.c.b16 %v229, %v221
    %v350 = vpack.c.b16 %v230, %v222
    %v351 = vpack.c.b16 %v231, %v223
    %v352 = vpack.c.b16 %v232, %v224
    %v353 = vpack.c.b16 %v241, %v233
    %v354 = vpack.c.b16 %v242, %v234
    %v355 = vpack.c.b16 %v243, %v235
    %v356 = vpack.c.b16 %v244, %v236
    %v357 = vpack.c.b16 %v245, %v237
    %v358 = vpack.c.b16 %v246, %v238
    %v359 = vpack.c.b16 %v247, %v239
    %v360 = vpack.c.b16 %v248, %v240
    %v361 = vpack.c.b16 %v257, %v249
    %v362 = vpack.c.b16 %v258, %v250
    %v363 = vpack.c.b16 %v259, %v251
    %v364 = vpack.c.b16 %v260, %v252
    %v365 = vpack.c.b16 %v261, %v253
    %v366 = vpack.c.b16 %v262, %v254
    %v367 = vpack.c.b16 %v263, %v255
    %v368 = vpack.c.b16 %v264, %v256
    %v369 = vpack.c.b16 %v273, %v265
    %v370 = vpack.c.b16 %v274, %v266
    %v371 = vpack.c.b16 %v275, %v267
    %v372 = vpack.c.b16 %v276, %v268
    %v373 = vpack.c.b16 %v277, %v269
    %v374 = vpack.c.b16 %v278, %v270
    %v375 = vpack.c.b16 %v279, %v271
    %v376 = vpack.c.b16 %v280, %v272
    %v377 = vpack.c.b16 %v289, %v281
    %v378 = vpack.c.b16 %v290, %v282
    %v379 = vpack.c.b16 %v291, %v283
    %v380 = vpack.c.b16 %v292, %v284
    %v381 = vpack.c.b16 %v293, %v285
    %v382 = vpack.c.b16 %v294, %v286
    %v383 = vpack.c.b16 %v295, %v287
    %v384 = vpack.c.b16 %v296, %v288
    %v385 = vpack.c.b16 %v305, %v297
    %v386 = vpack.c.b16 %v306, %v298
    %v387 = vpack.c.b16 %v307, %v299
    %v388 = vpack.c.b16 %v308, %v300
    %v389 = vpack.c.b16 %v309, %v301
    %v390 = vpack.c.b16 %v310, %v302
    %v391 = vpack.c.b16 %v311, %v303
    %v392 = vpack.c.b16 %v312, %v304
    %v393 = vpack.c.b16 %v321, %v313
    %v394 = vpack.c.b16 %v322, %v314
    %v395 = vpack.c.b16 %v323, %v315
    %v396 = vpack.c.b16 %v324, %v316
    %v397 = vpack.c.b16 %v325, %v317
    %v398 = vpack.c.b16 %v326, %v318
    %v399 = vpack.c.b16 %v327, %v319
    %v400 = vpack.c.b16 %v328, %v320
    %v401 = vpack.c.b16 %v337, %v329
    %v402 = vpack.c.b16 %v338, %v330
    %v403 = vpack.c.b16 %v339, %v331
    %v404 = vpack.c.b16 %v340, %v332
    %v405 = vpack.c.b16 %v341, %v333
    %v406 = vpack.c.b16 %v342, %v334
    %v407 = vpack.c.b16 %v343, %v335
    %v408 = vpack.c.b16 %v344, %v336
    %473 = vmatprep.subr.bf16.mxu0 %v346
    %474 = vmatpush1.bf16.msra.mxu0 %v345
    %475 = vmatprep.subr.bf16.mxu0 %v354
    %476 = vmatpush1.bf16.msra.mxu0 %v353
    %477 = vmatprep.subr.bf16.mxu0 %v362
    %478 = vmatpush1.bf16.msra.mxu0 %v361
    %479 = vmatprep.subr.bf16.mxu0 %v370
    %480 = vmatpush1.bf16.msra.mxu0 %v369
    %481 = vmatprep.subr.bf16.mxu0 %v378
    %482 = vmatpush1.bf16.msra.mxu0 %v377
    %483 = vmatprep.subr.bf16.mxu0 %v386
    %484 = vmatpush1.bf16.msra.mxu0 %v385
    %485 = vmatprep.subr.bf16.mxu0 %v394
    %486 = vmatpush1.bf16.msra.mxu0 %v393
    %487 = vmatprep.subr.bf16.mxu0 %v402
    %488 = vmatpush1.bf16.msra.mxu0 %v401
    %489 = vmatprep.subr.bf16.mxu0 0
    %490 = vmatpush1.bf16.msra.mxu0 0
    %491 = vmatprep.subr.bf16.mxu0 0
    %492 = vmatpush1.bf16.msra.mxu0 0
    %493 = vmatprep.subr.bf16.mxu0 0
    %494 = vmatpush1.bf16.msra.mxu0 0
    %495 = vmatprep.subr.bf16.mxu0 0
    %496 = vmatpush1.bf16.msra.mxu0 0
    %497 = vmatprep.subr.bf16.mxu0 0
    %498 = vmatpush1.bf16.msra.mxu0 0
    %499 = vmatprep.subr.bf16.mxu0 0
    %500 = vmatpush1.bf16.msra.mxu0 0
    %501 = vmatprep.subr.bf16.mxu0 0
    %502 = vmatpush1.bf16.msra.mxu0 0
    %503 = vmatprep.subr.bf16.mxu0 0
    %504 = vmatpush1.bf16.msra.mxu0 0
    %505 = vmatprep.mubr.bf16.mxu0 0
    %506 = vmatmul.mubr.bf16.gmra.mrb[0].mxu0 %v88
    %v507 = vpop.f32.mrb[0].mxu0
    %v508 = vadd.f32 0.0, %v507
    %v509 = vpop.f32.mrb[0].mxu0
    %v510 = vadd.f32 0.0, %v509
    %v511 = vpop.f32.mrb[0].mxu0
    %v512 = vadd.f32 0.0, %v511
    %v513 = vpop.f32.mrb[0].mxu0
    %v514 = vadd.f32 0.0, %v513
    %515 = vdwg.mxu0
    %516 = vmatprep.subr.bf16.mxu0 %v348
    %517 = vmatpush1.bf16.msra.mxu0 %v347
    %518 = vmatprep.subr.bf16.mxu0 %v356
    %519 = vmatpush1.bf16.msra.mxu0 %v355
    %520 = vmatprep.subr.bf16.mxu0 %v364
    %521 = vmatpush1.bf16.msra.mxu0 %v363
    %522 = vmatprep.subr.bf16.mxu0 %v372
    %523 = vmatpush1.bf16.msra.mxu0 %v371
    %524 = vmatprep.subr.bf16.mxu0 %v380
    %525 = vmatpush1.bf16.msra.mxu0 %v379
    %526 = vmatprep.subr.bf16.mxu0 %v388
    %527 = vmatpush1.bf16.msra.mxu0 %v387
    %528 = vmatprep.subr.bf16.mxu0 %v396
    %529 = vmatpush1.bf16.msra.mxu0 %v395
    %530 = vmatprep.subr.bf16.mxu0 %v404
    %531 = vmatpush1.bf16.msra.mxu0 %v403
    %532 = vmatprep.subr.bf16.mxu0 0
    %533 = vmatpush1.bf16.msra.mxu0 0
    %534 = vmatprep.subr.bf16.mxu0 0
    %535 = vmatpush1.bf16.msra.mxu0 0
    %536 = vmatprep.subr.bf16.mxu0 0
    %537 = vmatpush1.bf16.msra.mxu0 0
    %538 = vmatprep.subr.bf16.mxu0 0
    %539 = vmatpush1.bf16.msra.mxu0 0
    %540 = vmatprep.subr.bf16.mxu0 0
    %541 = vmatpush1.bf16.msra.mxu0 0
    %542 = vmatprep.subr.bf16.mxu0 0
    %543 = vmatpush1.bf16.msra.mxu0 0
    %544 = vmatprep.subr.bf16.mxu0 0
    %545 = vmatpush1.bf16.msra.mxu0 0
    %546 = vmatprep.subr.bf16.mxu0 0
    %547 = vmatpush1.bf16.msra.mxu0 0
    %548 = vmatprep.mubr.bf16.mxu0 0
    %549 = vmatmul.mubr.bf16.gmra.mrb[0].mxu0 %v88
    %v550 = vpop.f32.mrb[0].mxu0
    %v551 = vadd.f32 0.0, %v550
    %v552 = vpop.f32.mrb[0].mxu0
    %v553 = vadd.f32 0.0, %v552
    %v554 = vpop.f32.mrb[0].mxu0
    %v555 = vadd.f32 0.0, %v554
    %v556 = vpop.f32.mrb[0].mxu0
    %v557 = vadd.f32 0.0, %v556
    %558 = vdwg.mxu0
    %559 = vmatprep.subr.bf16.mxu0 %v350
    %560 = vmatpush1.bf16.msra.mxu0 %v349
    %561 = vmatprep.subr.bf16.mxu0 %v358
    %562 = vmatpush1.bf16.msra.mxu0 %v357
    %563 = vmatprep.subr.bf16.mxu0 %v366
    %564 = vmatpush1.bf16.msra.mxu0 %v365
    %565 = vmatprep.subr.bf16.mxu0 %v374
    %566 = vmatpush1.bf16.msra.mxu0 %v373
    %567 = vmatprep.subr.bf16.mxu0 %v382
    %568 = vmatpush1.bf16.msra.mxu0 %v381
    %569 = vmatprep.subr.bf16.mxu0 %v390
    %570 = vmatpush1.bf16.msra.mxu0 %v389
    %571 = vmatprep.subr.bf16.mxu0 %v398
    %572 = vmatpush1.bf16.msra.mxu0 %v397
    %573 = vmatprep.subr.bf16.mxu0 %v406
    %574 = vmatpush1.bf16.msra.mxu0 %v405
    %575 = vmatprep.subr.bf16.mxu0 0
    %576 = vmatpush1.bf16.msra.mxu0 0
    %577 = vmatprep.subr.bf16.mxu0 0
    %578 = vmatpush1.bf16.msra.mxu0 0
    %579 = vmatprep.subr.bf16.mxu0 0
    %580 = vmatpush1.bf16.msra.mxu0 0
    %581 = vmatprep.subr.bf16.mxu0 0
    %582 = vmatpush1.bf16.msra.mxu0 0
    %583 = vmatprep.subr.bf16.mxu0 0
    %584 = vmatpush1.bf16.msra.mxu0 0
    %585 = vmatprep.subr.bf16.mxu0 0
    %586 = vmatpush1.bf16.msra.mxu0 0
    %587 = vmatprep.subr.bf16.mxu0 0
    %588 = vmatpush1.bf16.msra.mxu0 0
    %589 = vmatprep.subr.bf16.mxu0 0
    %590 = vmatpush1.bf16.msra.mxu0 0
    %591 = vmatprep.mubr.bf16.mxu0 0
    %592 = vmatmul.mubr.bf16.gmra.mrb[0].mxu0 %v88
    %v593 = vpop.f32.mrb[0].mxu0
    %v594 = vadd.f32 0.0, %v593
    %v595 = vpop.f32.mrb[0].mxu0
    %v596 = vadd.f32 0.0, %v595
    %v597 = vpop.f32.mrb[0].mxu0
    %v598 = vadd.f32 0.0, %v597
    %v599 = vpop.f32.mrb[0].mxu0
    %v600 = vadd.f32 0.0, %v599
    %601 = vdwg.mxu0
    %602 = vmatprep.subr.bf16.mxu0 %v352
    %603 = vmatpush1.bf16.msra.mxu0 %v351
    %604 = vmatprep.subr.bf16.mxu0 %v360
    %605 = vmatpush1.bf16.msra.mxu0 %v359
    %606 = vmatprep.subr.bf16.mxu0 %v368
    %607 = vmatpush1.bf16.msra.mxu0 %v367
    %608 = vmatprep.subr.bf16.mxu0 %v376
    %609 = vmatpush1.bf16.msra.mxu0 %v375
    %610 = vmatprep.subr.bf16.mxu0 %v384
    %611 = vmatpush1.bf16.msra.mxu0 %v383
    %612 = vmatprep.subr.bf16.mxu0 %v392
    %613 = vmatpush1.bf16.msra.mxu0 %v391
    %614 = vmatprep.subr.bf16.mxu0 %v400
    %615 = vmatpush1.bf16.msra.mxu0 %v399
    %616 = vmatprep.subr.bf16.mxu0 %v408
    %617 = vmatpush1.bf16.msra.mxu0 %v407
    %618 = vmatprep.subr.bf16.mxu0 0
    %619 = vmatpush1.bf16.msra.mxu0 0
    %620 = vmatprep.subr.bf16.mxu0 0
    %621 = vmatpush1.bf16.msra.mxu0 0
    %622 = vmatprep.subr.bf16.mxu0 0
    %623 = vmatpush1.bf16.msra.mxu0 0
    %624 = vmatprep.subr.bf16.mxu0 0
    %625 = vmatpush1.bf16.msra.mxu0 0
    %626 = vmatprep.subr.bf16.mxu0 0
    %627 = vmatpush1.bf16.msra.mxu0 0
    %628 = vmatprep.subr.bf16.mxu0 0
    %629 = vmatpush1.bf16.msra.mxu0 0
    %630 = vmatprep.subr.bf16.mxu0 0
    %631 = vmatpush1.bf16.msra.mxu0 0
    %632 = vmatprep.subr.bf16.mxu0 0
    %633 = vmatpush1.bf16.msra.mxu0 0
    %634 = vmatprep.mubr.bf16.mxu0 0
    %635 = vmatmul.mubr.bf16.gmra.mrb[0].mxu0 %v88
    %v636 = vpop.f32.mrb[0].mxu0
    %v637 = vadd.f32 0.0, %v636
    %v638 = vpop.f32.mrb[0].mxu0
    %v639 = vadd.f32 0.0, %v638
    %v640 = vpop.f32.mrb[0].mxu0
    %v641 = vadd.f32 0.0, %v640
    %v642 = vpop.f32.mrb[0].mxu0
    %v643 = vadd.f32 0.0, %v642
    %644 = vdwg.mxu0
    %v645 = vld [vmem:[#allocation7] sm:$0xff]
    %v647 = vlaneseq
    %v648 = vshrl.u32 %v647, 7
    %v649 = vsub.s32 0, %v648
    %v650 = vrot.slane %v645, %v649
    %v651 = vlaneseq
    %v652 = vshrl.u32 %v651, 7
    %v653 = vsub.s32 2, %v652
    %v654 = vrot.slane %v645, %v653
    %v655 = vlaneseq
    %v656 = vshrl.u32 %v655, 7
    %v657 = vsub.s32 4, %v656
    %v658 = vrot.slane %v645, %v657
    %v659 = vlaneseq
    %v660 = vshrl.u32 %v659, 7
    %v661 = vsub.s32 6, %v660
    %v662 = vrot.slane %v645, %v661
    %v667 = vlaneseq
    %v668 = vshrl.u32 %v667, 7
    %v669 = vsub.s32 0, %v668
    %v670 = vrot.slane %v650, %v669
    %v671 = vlaneseq
    %v672 = vshrl.u32 %v671, 7
    %v673 = vsub.s32 0, %v672
    %v674 = vrot.slane %v654, %v673
    %v675 = vlaneseq
    %v676 = vshrl.u32 %v675, 7
    %v677 = vsub.s32 0, %v676
    %v678 = vrot.slane %v658, %v677
    %v679 = vlaneseq
    %v680 = vshrl.u32 %v679, 7
    %v681 = vsub.s32 0, %v680
    %v682 = vrot.slane %v662, %v681
    %v683 = vadd.f32 %v508, %v670
    %v684 = vadd.f32 %v510, %v674
    %v685 = vadd.f32 %v551, %v678
    %v686 = vadd.f32 %v553, %v682
    %v687 = vadd.f32 %v512, %v670
    %v688 = vadd.f32 %v514, %v674
    %v689 = vadd.f32 %v555, %v678
    %v690 = vadd.f32 %v557, %v682
    %v691 = vlaneseq
    %v692 = vshrl.u32 %v691, 7
    %v693 = vsub.s32 1, %v692
    %v694 = vrot.slane %v645, %v693
    %v695 = vlaneseq
    %v696 = vshrl.u32 %v695, 7
    %v697 = vsub.s32 3, %v696
    %v698 = vrot.slane %v645, %v697
    %v699 = vlaneseq
    %v700 = vshrl.u32 %v699, 7
    %v701 = vsub.s32 5, %v700
    %v702 = vrot.slane %v645, %v701
    %v703 = vlaneseq
    %v704 = vshrl.u32 %v703, 7
    %v705 = vsub.s32 7, %v704
    %v706 = vrot.slane %v645, %v705
    %v711 = vlaneseq
    %v712 = vshrl.u32 %v711, 7
    %v713 = vsub.s32 1, %v712
    %v714 = vrot.slane %v694, %v713
    %v715 = vlaneseq
    %v716 = vshrl.u32 %v715, 7
    %v717 = vsub.s32 1, %v716
    %v718 = vrot.slane %v698, %v717
    %v719 = vlaneseq
    %v720 = vshrl.u32 %v719, 7
    %v721 = vsub.s32 1, %v720
    %v722 = vrot.slane %v702, %v721
    %v723 = vlaneseq
    %v724 = vshrl.u32 %v723, 7
    %v725 = vsub.s32 1, %v724
    %v726 = vrot.slane %v706, %v725
    %v727 = vadd.f32 %v594, %v714
    %v728 = vadd.f32 %v596, %v718
    %v729 = vadd.f32 %v637, %v722
    %v730 = vadd.f32 %v639, %v726
    %v731 = vadd.f32 %v598, %v714
    %v732 = vadd.f32 %v600, %v718
    %v733 = vadd.f32 %v641, %v722
    %v734 = vadd.f32 %v643, %v726
    %v735 = vmul.f32 %v727, 0.5
    %v736 = vmul.f32 %v728, 0.5
    %v737 = vmul.f32 %v729, 0.5
    %v738 = vmul.f32 %v730, 0.5
    %v739 = vmul.f32 %v731, 0.5
    %v740 = vmul.f32 %v732, 0.5
    %v741 = vmul.f32 %v733, 0.5
    %v742 = vmul.f32 %v734, 0.5
    %v743 = vmul.f32 %v727, 0.044715
    %v744 = vmul.f32 %v728, 0.044715
    %v745 = vmul.f32 %v729, 0.044715
    %v746 = vmul.f32 %v730, 0.044715
    %v747 = vmul.f32 %v731, 0.044715
    %v748 = vmul.f32 %v732, 0.044715
    %v749 = vmul.f32 %v733, 0.044715
    %v750 = vmul.f32 %v734, 0.044715
    %v751 = vmul.f32 %v743, %v727
    %v752 = vmul.f32 %v744, %v728
    %v753 = vmul.f32 %v745, %v729
    %v754 = vmul.f32 %v746, %v730
    %v755 = vmul.f32 %v747, %v731
    %v756 = vmul.f32 %v748, %v732
    %v757 = vmul.f32 %v749, %v733
    %v758 = vmul.f32 %v750, %v734
    %v759 = vmul.f32 %v751, %v727
    %v760 = vmul.f32 %v752, %v728
    %v761 = vmul.f32 %v753, %v729
    %v762 = vmul.f32 %v754, %v730
    %v763 = vmul.f32 %v755, %v731
    %v764 = vmul.f32 %v756, %v732
    %v765 = vmul.f32 %v757, %v733
    %v766 = vmul.f32 %v758, %v734
    %v767 = vadd.f32 %v727, %v759
    %v768 = vadd.f32 %v728, %v760
    %v769 = vadd.f32 %v729, %v761
    %v770 = vadd.f32 %v730, %v762
    %v771 = vadd.f32 %v731, %v763
    %v772 = vadd.f32 %v732, %v764
    %v773 = vadd.f32 %v733, %v765
    %v774 = vadd.f32 %v734, %v766
    %v775 = vmul.f32 %v767, 0.7978846
    %v776 = vmul.f32 %v768, 0.7978846
    %v777 = vmul.f32 %v769, 0.7978846
    %v778 = vmul.f32 %v770, 0.7978846
    %v779 = vmul.f32 %v771, 0.7978846
    %v780 = vmul.f32 %v772, 0.7978846
    %v781 = vmul.f32 %v773, 0.7978846
    %v782 = vmul.f32 %v774, 0.7978846
    %v783 = vtanh.pop %v775
    %v784 = vtanh.pop %v776
    %v785 = vtanh.pop %v777
    %v786 = vtanh.pop %v778
    %v787 = vtanh.pop %v779
    %v788 = vtanh.pop %v780
    %v789 = vtanh.pop %v781
    %v790 = vtanh.pop %v782
    %v791 = vadd.f32 %v783, 1.0
    %v792 = vadd.f32 %v784, 1.0
    %v793 = vadd.f32 %v785, 1.0
    %v794 = vadd.f32 %v786, 1.0
    %v795 = vadd.f32 %v787, 1.0
    %v796 = vadd.f32 %v788, 1.0
    %v797 = vadd.f32 %v789, 1.0
    %v798 = vadd.f32 %v790, 1.0
    %v799 = vmul.f32 %v735, %v791
    %v800 = vmul.f32 %v736, %v792
    %v801 = vmul.f32 %v737, %v793
    %v802 = vmul.f32 %v738, %v794
    %v803 = vmul.f32 %v739, %v795
    %v804 = vmul.f32 %v740, %v796
    %v805 = vmul.f32 %v741, %v797
    %v806 = vmul.f32 %v742, %v798
    %v807 = vmul.f32 %v683, %v799
    %v808 = vmul.f32 %v684, %v800
    %v809 = vmul.f32 %v685, %v801
    %v810 = vmul.f32 %v686, %v802
    %v811 = vmul.f32 %v687, %v803
    %v812 = vmul.f32 %v688, %v804
    %v813 = vmul.f32 %v689, %v805
    %v814 = vmul.f32 %v690, %v806
    %v815 = vpack.c.bf16 %v811, %v807
    %v816 = vpack.c.bf16 %v812, %v808
    %v817 = vpack.c.bf16 %v813, %v809
    %v818 = vpack.c.bf16 %v814, %v810
    %v819 = vld [vmem:[#allocation8] sm:$0xf]
    %v820 = vld [vmem:[#allocation8 + $0x4] sm:$0xf]
    %v821 = vld [vmem:[#allocation8 + $0x8] sm:$0xf]
    %v822 = vld [vmem:[#allocation8 + $0xc] sm:$0xf]
    %v823 = vld [vmem:[#allocation8 + $0x10] sm:$0xf]
    %v824 = vld [vmem:[#allocation8 + $0x14] sm:$0xf]
    %v825 = vld [vmem:[#allocation8 + $0x18] sm:$0xf]
    %v826 = vld [vmem:[#allocation8 + $0x1c] sm:$0xf]
    %v827 = vld [vmem:[#allocation8 + $0x20] sm:$0xf]
    %v828 = vld [vmem:[#allocation8 + $0x24] sm:$0xf]
    %v829 = vld [vmem:[#allocation8 + $0x28] sm:$0xf]
    %v830 = vld [vmem:[#allocation8 + $0x2c] sm:$0xf]
    %v831 = vld [vmem:[#allocation8 + $0x30] sm:$0xf]
    %v832 = vld [vmem:[#allocation8 + $0x34] sm:$0xf]
    %v833 = vld [vmem:[#allocation8 + $0x38] sm:$0xf]
    %v834 = vld [vmem:[#allocation8 + $0x3c] sm:$0xf]
    %v835 = vld [vmem:[#allocation8 + $0x40] sm:$0xf]
    %v836 = vld [vmem:[#allocation8 + $0x44] sm:$0xf]
    %v837 = vld [vmem:[#allocation8 + $0x48] sm:$0xf]
    %v838 = vld [vmem:[#allocation8 + $0x4c] sm:$0xf]
    %v839 = vld [vmem:[#allocation8 + $0x50] sm:$0xf]
    %v840 = vld [vmem:[#allocation8 + $0x54] sm:$0xf]
    %v841 = vld [vmem:[#allocation8 + $0x58] sm:$0xf]
    %v842 = vld [vmem:[#allocation8 + $0x5c] sm:$0xf]
    %v843 = vld [vmem:[#allocation8 + $0x60] sm:$0xf]
    %v844 = vld [vmem:[#allocation8 + $0x64] sm:$0xf]
    %v845 = vld [vmem:[#allocation8 + $0x68] sm:$0xf]
    %v846 = vld [vmem:[#allocation8 + $0x6c] sm:$0xf]
    %v847 = vld [vmem:[#allocation8 + $0x70] sm:$0xf]
    %v848 = vld [vmem:[#allocation8 + $0x74] sm:$0xf]
    %v849 = vld [vmem:[#allocation8 + $0x78] sm:$0xf]
    %v850 = vld [vmem:[#allocation8 + $0x7c] sm:$0xf]
    %v851 = vld [vmem:[#allocation8 + $0x80] sm:$0xf]
    %v852 = vld [vmem:[#allocation8 + $0x84] sm:$0xf]
    %v853 = vld [vmem:[#allocation8 + $0x88] sm:$0xf]
    %v854 = vld [vmem:[#allocation8 + $0x8c] sm:$0xf]
    %v855 = vld [vmem:[#allocation8 + $0x90] sm:$0xf]
    %v856 = vld [vmem:[#allocation8 + $0x94] sm:$0xf]
    %v857 = vld [vmem:[#allocation8 + $0x98] sm:$0xf]
    %v858 = vld [vmem:[#allocation8 + $0x9c] sm:$0xf]
    %v859 = vld [vmem:[#allocation8 + $0xa0] sm:$0xf]
    %v860 = vld [vmem:[#allocation8 + $0xa4] sm:$0xf]
    %v861 = vld [vmem:[#allocation8 + $0xa8] sm:$0xf]
    %v862 = vld [vmem:[#allocation8 + $0xac] sm:$0xf]
    %v863 = vld [vmem:[#allocation8 + $0xb0] sm:$0xf]
    %v864 = vld [vmem:[#allocation8 + $0xb4] sm:$0xf]
    %v865 = vld [vmem:[#allocation8 + $0xb8] sm:$0xf]
    %v866 = vld [vmem:[#allocation8 + $0xbc] sm:$0xf]
    %v867 = vld [vmem:[#allocation8 + $0xc0] sm:$0xf]
    %v868 = vld [vmem:[#allocation8 + $0xc4] sm:$0xf]
    %v869 = vld [vmem:[#allocation8 + $0xc8] sm:$0xf]
    %v870 = vld [vmem:[#allocation8 + $0xcc] sm:$0xf]
    %v871 = vld [vmem:[#allocation8 + $0xd0] sm:$0xf]
    %v872 = vld [vmem:[#allocation8 + $0xd4] sm:$0xf]
    %v873 = vld [vmem:[#allocation8 + $0xd8] sm:$0xf]
    %v874 = vld [vmem:[#allocation8 + $0xdc] sm:$0xf]
    %v875 = vld [vmem:[#allocation8 + $0xe0] sm:$0xf]
    %v876 = vld [vmem:[#allocation8 + $0xe4] sm:$0xf]
    %v877 = vld [vmem:[#allocation8 + $0xe8] sm:$0xf]
    %v878 = vld [vmem:[#allocation8 + $0xec] sm:$0xf]
    %v879 = vld [vmem:[#allocation8 + $0xf0] sm:$0xf]
    %v880 = vld [vmem:[#allocation8 + $0xf4] sm:$0xf]
    %v881 = vld [vmem:[#allocation8 + $0xf8] sm:$0xf]
    %v882 = vld [vmem:[#allocation8 + $0xfc] sm:$0xf]
    %v883 = vld [vmem:[#allocation10] sm:$0x1]
    %v885 = vlaneseq
    %v886 = vshrl.u32 %v885, 7
    %v887 = vsub.s32 0, %v886
    %v888 = vrot.slane %v883, %v887
    %v954 = vunpack.c.l.b16 %v819
    %v955 = vunpack.c.l.b16 %v820
    %v956 = vunpack.c.l.b16 %v821
    %v957 = vunpack.c.l.b16 %v822
    %v958 = vunpack.c.l.b16 %v823
    %v959 = vunpack.c.l.b16 %v824
    %v960 = vunpack.c.l.b16 %v825
    %v961 = vunpack.c.l.b16 %v826
    %v962 = vunpack.c.l.b16 %v827
    %v963 = vunpack.c.l.b16 %v828
    %v964 = vunpack.c.l.b16 %v829
    %v965 = vunpack.c.l.b16 %v830
    %v966 = vunpack.c.l.b16 %v831
    %v967 = vunpack.c.l.b16 %v832
    %v968 = vunpack.c.l.b16 %v833
    %v969 = vunpack.c.l.b16 %v834
    %v970 = vunpack.c.l.b16 %v835
    %v971 = vunpack.c.l.b16 %v836
    %v972 = vunpack.c.l.b16 %v837
    %v973 = vunpack.c.l.b16 %v838
    %v974 = vunpack.c.l.b16 %v839
    %v975 = vunpack.c.l.b16 %v840
    %v976 = vunpack.c.l.b16 %v841
    %v977 = vunpack.c.l.b16 %v842
    %v978 = vunpack.c.l.b16 %v843
    %v979 = vunpack.c.l.b16 %v844
    %v980 = vunpack.c.l.b16 %v845
    %v981 = vunpack.c.l.b16 %v846
    %v982 = vunpack.c.l.b16 %v847
    %v983 = vunpack.c.l.b16 %v848
    %v984 = vunpack.c.l.b16 %v849
    %v985 = vunpack.c.l.b16 %v850
    %v986 = vunpack.c.l.b16 %v851
    %v987 = vunpack.c.l.b16 %v852
    %v988 = vunpack.c.l.b16 %v853
    %v989 = vunpack.c.l.b16 %v854
    %v990 = vunpack.c.l.b16 %v855
    %v991 = vunpack.c.l.b16 %v856
    %v992 = vunpack.c.l.b16 %v857
    %v993 = vunpack.c.l.b16 %v858
    %v994 = vunpack.c.l.b16 %v859
    %v995 = vunpack.c.l.b16 %v860
    %v996 = vunpack.c.l.b16 %v861
    %v997 = vunpack.c.l.b16 %v862
    %v998 = vunpack.c.l.b16 %v863
    %v999 = vunpack.c.l.b16 %v864
    %v1000 = vunpack.c.l.b16 %v865
    %v1001 = vunpack.c.l.b16 %v866
    %v1002 = vunpack.c.l.b16 %v867
    %v1003 = vunpack.c.l.b16 %v868
    %v1004 = vunpack.c.l.b16 %v869
    %v1005 = vunpack.c.l.b16 %v870
    %v1006 = vunpack.c.l.b16 %v871
    %v1007 = vunpack.c.l.b16 %v872
    %v1008 = vunpack.c.l.b16 %v873
    %v1009 = vunpack.c.l.b16 %v874
    %v1010 = vunpack.c.l.b16 %v875
    %v1011 = vunpack.c.l.b16 %v876
    %v1012 = vunpack.c.l.b16 %v877
    %v1013 = vunpack.c.l.b16 %v878
    %v1014 = vunpack.c.l.b16 %v879
    %v1015 = vunpack.c.l.b16 %v880
    %v1016 = vunpack.c.l.b16 %v881
    %v1017 = vunpack.c.l.b16 %v882
    %v1018 = vpack.c.b16 %v955, %v954
    %v1019 = vpack.c.b16 %v957, %v956
    %v1020 = vpack.c.b16 %v959, %v958
    %v1021 = vpack.c.b16 %v961, %v960
    %v1022 = vpack.c.b16 %v963, %v962
    %v1023 = vpack.c.b16 %v965, %v964
    %v1024 = vpack.c.b16 %v967, %v966
    %v1025 = vpack.c.b16 %v969, %v968
    %v1026 = vpack.c.b16 %v971, %v970
    %v1027 = vpack.c.b16 %v973, %v972
    %v1028 = vpack.c.b16 %v975, %v974
    %v1029 = vpack.c.b16 %v977, %v976
    %v1030 = vpack.c.b16 %v979, %v978
    %v1031 = vpack.c.b16 %v981, %v980
    %v1032 = vpack.c.b16 %v983, %v982
    %v1033 = vpack.c.b16 %v985, %v984
    %v1034 = vpack.c.b16 %v987, %v986
    %v1035 = vpack.c.b16 %v989, %v988
    %v1036 = vpack.c.b16 %v991, %v990
    %v1037 = vpack.c.b16 %v993, %v992
    %v1038 = vpack.c.b16 %v995, %v994
    %v1039 = vpack.c.b16 %v997, %v996
    %v1040 = vpack.c.b16 %v999, %v998
    %v1041 = vpack.c.b16 %v1001, %v1000
    %v1042 = vpack.c.b16 %v1003, %v1002
    %v1043 = vpack.c.b16 %v1005, %v1004
    %v1044 = vpack.c.b16 %v1007, %v1006
    %v1045 = vpack.c.b16 %v1009, %v1008
    %v1046 = vpack.c.b16 %v1011, %v1010
    %v1047 = vpack.c.b16 %v1013, %v1012
    %v1048 = vpack.c.b16 %v1015, %v1014
    %v1049 = vpack.c.b16 %v1017, %v1016
    %1082 = vmatprep.subr.bf16.mxu0 0
    %1083 = vmatpush1.bf16.msra.mxu0 %v1018
    %1084 = vmatprep.subr.bf16.mxu0 0
    %1085 = vmatpush1.bf16.msra.mxu0 %v1019
    %1086 = vmatprep.subr.bf16.mxu0 0
    %1087 = vmatpush1.bf16.msra.mxu0 %v1020
    %1088 = vmatprep.subr.bf16.mxu0 0
    %1089 = vmatpush1.bf16.msra.mxu0 %v1021
    %1090 = vmatprep.subr.bf16.mxu0 0
    %1091 = vmatpush1.bf16.msra.mxu0 %v1022
    %1092 = vmatprep.subr.bf16.mxu0 0
    %1093 = vmatpush1.bf16.msra.mxu0 %v1023
    %1094 = vmatprep.subr.bf16.mxu0 0
    %1095 = vmatpush1.bf16.msra.mxu0 %v1024
    %1096 = vmatprep.subr.bf16.mxu0 0
    %1097 = vmatpush1.bf16.msra.mxu0 %v1025
    %1098 = vmatprep.subr.bf16.mxu0 0
    %1099 = vmatpush1.bf16.msra.mxu0 %v1026
    %1100 = vmatprep.subr.bf16.mxu0 0
    %1101 = vmatpush1.bf16.msra.mxu0 %v1027
    %1102 = vmatprep.subr.bf16.mxu0 0
    %1103 = vmatpush1.bf16.msra.mxu0 %v1028
    %1104 = vmatprep.subr.bf16.mxu0 0
    %1105 = vmatpush1.bf16.msra.mxu0 %v1029
    %1106 = vmatprep.subr.bf16.mxu0 0
    %1107 = vmatpush1.bf16.msra.mxu0 %v1030
    %1108 = vmatprep.subr.bf16.mxu0 0
    %1109 = vmatpush1.bf16.msra.mxu0 %v1031
    %1110 = vmatprep.subr.bf16.mxu0 0
    %1111 = vmatpush1.bf16.msra.mxu0 %v1032
    %1112 = vmatprep.subr.bf16.mxu0 0
    %1113 = vmatpush1.bf16.msra.mxu0 %v1033
    %1114 = vmatprep.mubr.bf16.mxu0 %v816
    %1115 = vmatmul.mubr.bf16.gmra.mrb[0].mxu0 %v815
    %v1116 = vpop.f32.mrb[0].mxu0
    %v1117 = vadd.f32 %v888, %v1116
    %v1118 = vpop.f32.mrb[0].mxu0
    %v1119 = vpop.f32.mrb[0].mxu0
    %v1120 = vadd.f32 %v888, %v1119
    %v1121 = vpop.f32.mrb[0].mxu0
    %1122 = vdwg.mxu0
    %1123 = vmatprep.subr.bf16.mxu0 0
    %1124 = vmatpush1.bf16.msra.mxu0 %v1034
    %1125 = vmatprep.subr.bf16.mxu0 0
    %1126 = vmatpush1.bf16.msra.mxu0 %v1035
    %1127 = vmatprep.subr.bf16.mxu0 0
    %1128 = vmatpush1.bf16.msra.mxu0 %v1036
    %1129 = vmatprep.subr.bf16.mxu0 0
    %1130 = vmatpush1.bf16.msra.mxu0 %v1037
    %1131 = vmatprep.subr.bf16.mxu0 0
    %1132 = vmatpush1.bf16.msra.mxu0 %v1038
    %1133 = vmatprep.subr.bf16.mxu0 0
    %1134 = vmatpush1.bf16.msra.mxu0 %v1039
    %1135 = vmatprep.subr.bf16.mxu0 0
    %1136 = vmatpush1.bf16.msra.mxu0 %v1040
    %1137 = vmatprep.subr.bf16.mxu0 0
    %1138 = vmatpush1.bf16.msra.mxu0 %v1041
    %1139 = vmatprep.subr.bf16.mxu0 0
    %1140 = vmatpush1.bf16.msra.mxu0 %v1042
    %1141 = vmatprep.subr.bf16.mxu0 0
    %1142 = vmatpush1.bf16.msra.mxu0 %v1043
    %1143 = vmatprep.subr.bf16.mxu0 0
    %1144 = vmatpush1.bf16.msra.mxu0 %v1044
    %1145 = vmatprep.subr.bf16.mxu0 0
    %1146 = vmatpush1.bf16.msra.mxu0 %v1045
    %1147 = vmatprep.subr.bf16.mxu0 0
    %1148 = vmatpush1.bf16.msra.mxu0 %v1046
    %1149 = vmatprep.subr.bf16.mxu0 0
    %1150 = vmatpush1.bf16.msra.mxu0 %v1047
    %1151 = vmatprep.subr.bf16.mxu0 0
    %1152 = vmatpush1.bf16.msra.mxu0 %v1048
    %1153 = vmatprep.subr.bf16.mxu0 0
    %1154 = vmatpush1.bf16.msra.mxu0 %v1049
    %1155 = vmatprep.mubr.bf16.mxu0 %v818
    %1156 = vmatmul.mubr.bf16.gmra.mrb[0].mxu0 %v817
    %v1157 = vpop.f32.mrb[0].mxu0
    %v1158 = vadd.f32 %v1117, %v1157
    %v1159 = vpop.f32.mrb[0].mxu0
    %v1160 = vpop.f32.mrb[0].mxu0
    %v1161 = vadd.f32 %v1120, %v1160
    %v1162 = vpop.f32.mrb[0].mxu0
    %1163 = vdwg.mxu0
    %1164 = vst [vmem:[#allocation11] sm:$0xff] %v1158
    %1165 = vst [vmem:[#allocation11 + $0x8] sm:$0xff] %v1161
    // Predicated region
    $region42: #{tpu_custom_call.1} parent=1 // pred_check
      _
    $region43: #{tpu_custom_call.1} parent=1 // pred_check_branch
      %1167 = sbr.rel (0) target = $region45
    $region44: #{tpu_custom_call.1} parent=1 // pred_region
      %s1169 = ssub.s32 256, 256
      %1170 = vsyncadd [#allocation4], %s1169
      %s1171 = sshll.u32 [#allocation11], 4
      %s1172 = int_to_ptr.vmem [resolvable:$true] %s1171
      %1177 = dma.vmem_to_hbm [thread:$0]  %s1172, 256, %s5, [#allocation4], 128, 128, 8
    $region45: #{tpu_custom_call.1} parent=1 // pred_fallthru
      _
    // Predicated region
    $region46: #{tpu_custom_call.1} parent=1 // pred_check
      _
    $region47: #{tpu_custom_call.1} parent=1 // pred_check_branch
      %1179 = sbr.rel (0) target = $region49
    $region48: #{tpu_custom_call.1} parent=1 // pred_region
      %1180 = dma.done [#allocation4], 256
    $region49: #{tpu_custom_call.1} parent=1 // pred_fallthru
      _
    %1181 = vsyncpa [#allocation3], 1
    %1182 = vsyncpa [#allocation6], 1
    %1183 = vsyncpa [#allocation9], 1
    %1184 = vsyncpa [#allocation4], 1

</llo_original>
